<compile_context>
chip_gen: v5e
topology: v5e:2x2
jax: 0.10.0
libtpu: 0.0.40
codegen_flags: <defaults>
</compile_context>

<pallas_src>
import math

import jax
import jax.numpy as jnp
from jax.experimental import pallas as pl
from jax.experimental.pallas import tpu as pltpu


def _round_up(a: int, b: int) -> int:
    return ((a + b - 1) // b) * b


def _gelu_exact_f32(x):
    # PyTorch nn.GELU() default = exact erf formulation.
    return 0.5 * x * (1.0 + jax.lax.erf(x * (1.0 / math.sqrt(2.0))))


def _make_mlp_kernel(hidden: int, hidden_chunk: int, approximate_gelu: bool):
    """Build the kernel with static hidden-dim chunk bounds."""
    bounds = []
    lo = 0
    while lo < hidden:
        hi = min(lo + hidden_chunk, hidden)
        bounds.append((lo, hi))
        lo = hi

    def kernel(x_ref, w1_ref, b1_ref, w2_ref, b2_ref, o_ref):
        # x_ref:  (tm, in)       row tile, native dtype (cast here)
        # w1_ref: (in, hidden)   resident, compute dtype (bf16)
        # b1_ref: (1, hidden)    f32
        # w2_ref: (hidden, out)  resident, compute dtype (bf16)
        # b2_ref: (1, out)       f32
        # o_ref:  (tm, out)      output dtype
        x = x_ref[...].astype(w1_ref.dtype)
        y = None
        for (c_lo, c_hi) in bounds:
            h = jnp.dot(x, w1_ref[:, c_lo:c_hi],
                        preferred_element_type=jnp.float32) + b1_ref[:, c_lo:c_hi]
            if approximate_gelu:
                h = jax.nn.gelu(h, approximate=True)     # tanh form -> EUP
            else:
                h = _gelu_exact_f32(h)                   # matches nn.GELU()
            # dropout(p=0.0) is identity -> nothing to do
            p = jnp.dot(h.astype(w2_ref.dtype), w2_ref[c_lo:c_hi, :],
                        preferred_element_type=jnp.float32)
            y = p if y is None else y + p
        o_ref[...] = (y + b2_ref[...]).astype(o_ref.dtype)

    return kernel


def prepare_mlp_params(w1, b1, w2, b2, compute_dtype=jnp.bfloat16):
    """One-time prep: transpose PyTorch-layout weights to (in, out) and cast.

    w1: (hidden, in), b1: (hidden,), w2: (out, hidden), b2: (out,).
    """
    w1_t = jnp.asarray(w1).T.astype(compute_dtype)       # (in, hidden)
    w2_t = jnp.asarray(w2).T.astype(compute_dtype)       # (hidden, out)
    b1_2 = jnp.asarray(b1, jnp.float32).reshape(1, -1)    # (1, hidden)
    b2_2 = jnp.asarray(b2, jnp.float32).reshape(1, -1)    # (1, out)
    return w1_t, b1_2, w2_t, b2_2


def _pick_row_tile(M: int, tm: int) -> int:
    """Large tiles for MXU amortization; >=2 grid steps when possible (v7x
    megacore); no overshoot on small / decode-style inputs."""
    if M >= 2 * tm:
        return tm
    if M > 128:
        # split into (at least) two steps, lane/sublane friendly
        return max(128, _round_up(pl.cdiv(M, 2), 128))
    return _round_up(max(M, 8), 8)


def _vmem_limit_bytes(required: int) -> int:
    cap = 64 << 20  # conservative default (v7x per-TC VMEM)
    try:
        info = pltpu.get_tpu_info()
        cap = int(getattr(info, "vmem_capacity_bytes", cap))
    except Exception:
        pass
    limit = max(32 << 20, int(required * 1.25) + (8 << 20))
    return max(16 << 20, min(limit, cap - (4 << 20)))


def mlp_forward(x, w1_t, b1_2, w2_t, b2_2, *, tm=512, hidden_chunk=512,
                out_dtype=None, approximate_gelu=False):
    """x: (B, N, C); w1_t: (C, hidden); b1_2: (1, hidden);
    w2_t: (hidden, out); b2_2: (1, out)."""
    B, N, C = x.shape
    hidden = w1_t.shape[1]
    out_f = w2_t.shape[1]
    out_dtype = out_dtype or x.dtype
    compute_dtype = w1_t.dtype
    M = B * N

    tm_eff = _pick_row_tile(M, tm)
    grid = (pl.cdiv(M, tm_eff),)
    chunk = min(hidden_chunk, hidden)

    # Reshape only (no cast / pad); reshape of contiguous (B,N,C)->(M,C) is free.
    x2 = x.reshape(M, C)

    xbytes = jnp.dtype(x.dtype).itemsize
    cbytes = jnp.dtype(compute_dtype).itemsize
    obytes = jnp.dtype(out_dtype).itemsize

    # VMEM footprint: single-buffered weights/biases, double-buffered x/out
    # tiles, f32 chunk intermediates + f32 accumulator.
    req = ((C * hidden + hidden * out_f) * cbytes
           + (hidden + out_f) * 4
           + 2 * tm_eff * C * xbytes
           + 2 * tm_eff * out_f * obytes
           + 2 * tm_eff * chunk * 4
           + tm_eff * out_f * 4)

    cost = pl.CostEstimate(
        flops=2 * M * (C * hidden + hidden * out_f),
        transcendentals=M * hidden,                       # erf per hidden elem
        bytes_accessed=(M * C * xbytes                    # x
                        + C * hidden * cbytes             # w1
                        + hidden * out_f * cbytes         # w2
                        + (hidden + out_f) * 4            # biases (f32)
                        + M * out_f * obytes),            # y
    )

    kernel = _make_mlp_kernel(hidden, chunk, approximate_gelu)
    resident = dict(pipeline_mode=pl.Buffered(1))

    out = pl.pallas_call(
        kernel,
        out_shape=jax.ShapeDtypeStruct((M, out_f), out_dtype),
        grid_spec=pltpu.PrefetchScalarGridSpec(
            num_scalar_prefetch=0,
            grid=grid,
            in_specs=[
                pl.BlockSpec((tm_eff, C), lambda i: (i, 0)),              # x row tile
                pl.BlockSpec((C, hidden), lambda i: (0, 0), **resident),  # w1 resident
                pl.BlockSpec((1, hidden), lambda i: (0, 0), **resident),  # b1 resident
                pl.BlockSpec((hidden, out_f), lambda i: (0, 0), **resident),  # w2
                pl.BlockSpec((1, out_f), lambda i: (0, 0), **resident),   # b2 resident
            ],
            out_specs=pl.BlockSpec((tm_eff, out_f), lambda i: (i, 0)),
        ),
        compiler_params=pltpu.CompilerParams(
            dimension_semantics=("parallel",),
            vmem_limit_bytes=_vmem_limit_bytes(req),
        ),
        cost_estimate=cost,
    )(x2, w1_t, b1_2, w2_t, b2_2)

    return out.reshape(B, N, out_f)


def init_mlp_params(key, in_features, hidden_features, out_features, dtype=jnp.float32):
    k1, k2, k3, k4 = jax.random.split(key, 4)
    # deterministic synthetic init (nn.Linear-like scale), PyTorch layout
    lim1 = 1.0 / math.sqrt(in_features)
    lim2 = 1.0 / math.sqrt(hidden_features)
    w1 = jax.random.uniform(k1, (hidden_features, in_features), dtype, -lim1, lim1)
    b1 = jax.random.uniform(k2, (hidden_features,), dtype, -lim1, lim1)
    w2 = jax.random.uniform(k3, (out_features, hidden_features), dtype, -lim2, lim2)
    b2 = jax.random.uniform(k4, (out_features,), dtype, -lim2, lim2)
    return w1, b1, w2, b2


if __name__ == "__main__":
    # Small DeiT-like shapes: batch=2, tokens=8, in_features=32, hidden=64
    B, N, C, H = 2, 8, 32, 64
    key = jax.random.PRNGKey(0)
    kx, kp = jax.random.split(key)
    x = jax.random.normal(kx, (B, N, C), jnp.float32)
    w1, b1, w2, b2 = init_mlp_params(kp, C, H, C)

    params = prepare_mlp_params(w1, b1, w2, b2, compute_dtype=jnp.bfloat16)
    y = mlp_forward(x, *params)
    y = jax.block_until_ready(y)

    # Reference with matching mixed precision (bf16 operands, f32 accumulation)
    cd = jnp.bfloat16
    h_ref = _gelu_exact_f32(
        jnp.dot(x.astype(cd), w1.T.astype(cd),
                preferred_element_type=jnp.float32) + b1)
    y_ref = jnp.dot(h_ref.astype(cd), w2.T.astype(cd),
                    preferred_element_type=jnp.float32) + b2

    assert y.shape == (B, N, C)
    assert jnp.allclose(y.astype(jnp.float32), y_ref, atol=5e-3, rtol=5e-3)

    print("KERNEL_OK")
</pallas_src>

<mosaic_0001>
module attributes {stable_mosaic.version = 11 : i64} {
  func.func @kernel(%arg0: i32, %arg1: memref<16x32xf32, #tpu.memory_space<vmem>>, %arg2: memref<32x64xbf16, #tpu.memory_space<vmem>>, %arg3: memref<1x64xf32, #tpu.memory_space<vmem>>, %arg4: memref<64x32xbf16, #tpu.memory_space<vmem>>, %arg5: memref<1x32xf32, #tpu.memory_space<vmem>>, %arg6: memref<16x32xf32, #tpu.memory_space<vmem>>) attributes {dimension_semantics = [#tpu.dimension_semantics<parallel>], iteration_bounds = array<i64: 1>, scalar_prefetch = 0 : i64, scratch_operands = 0 : i64, tpu.core_type = #tpu.core_type<tc>, window_params = [{transform_indices = @transform_0, window_bounds = array<i64: 16, 32>}, {pipeline_mode = #tpu.pipeline_mode<synchronous>, transform_indices = @transform_1, window_bounds = array<i64: 32, 64>}, {pipeline_mode = #tpu.pipeline_mode<synchronous>, transform_indices = @transform_2, window_bounds = array<i64: 1, 64>}, {pipeline_mode = #tpu.pipeline_mode<synchronous>, transform_indices = @transform_3, window_bounds = array<i64: 64, 32>}, {pipeline_mode = #tpu.pipeline_mode<synchronous>, transform_indices = @transform_4, window_bounds = array<i64: 1, 32>}, {transform_indices = @transform_5, window_bounds = array<i64: 16, 32>}]} {
    %c0 = arith.constant 0 : index
    %c0_0 = arith.constant 0 : index
    %0 = vector.load %arg1[%c0, %c0_0] : memref<16x32xf32, #tpu.memory_space<vmem>>, vector<16x32xf32>
    %1 = arith.truncf %0 : vector<16x32xf32> to vector<16x32xbf16>
    %c0_1 = arith.constant 0 : index
    %c0_2 = arith.constant 0 : index
    %2 = vector.load %arg2[%c0_1, %c0_2] : memref<32x64xbf16, #tpu.memory_space<vmem>>, vector<32x64xbf16>
    %cst = arith.constant dense<0.000000e+00> : vector<16x64xf32>
    %3 = tpu.matmul %1, %2, %cst {dimension_numbers = #tpu.dot_dimension_numbers<[1], [0], [0], [1], [0, 0, 1, 1], [], []>} : vector<16x32xbf16>, vector<32x64xbf16>, vector<16x64xf32> -> vector<16x64xf32>
    %c0_3 = arith.constant 0 : index
    %c0_4 = arith.constant 0 : index
    %4 = vector.load %arg3[%c0_3, %c0_4] : memref<1x64xf32, #tpu.memory_space<vmem>>, vector<1x64xf32>
    %5 = vector.broadcast %4 : vector<1x64xf32> to vector<16x64xf32>
    %6 = arith.addf %3, %5 : vector<16x64xf32>
    %cst_5 = arith.constant 5.000000e-01 : f32
    %7 = vector.broadcast %cst_5 : f32 to vector<16x64xf32>
    %8 = arith.mulf %7, %6 : vector<16x64xf32>
    %cst_6 = arith.constant 0.707106769 : f32
    %9 = vector.broadcast %cst_6 : f32 to vector<16x64xf32>
    %10 = arith.mulf %6, %9 : vector<16x64xf32>
    %11 = math.erf %10 : vector<16x64xf32>
    %cst_7 = arith.constant 1.000000e+00 : f32
    %12 = vector.broadcast %cst_7 : f32 to vector<16x64xf32>
    %13 = arith.addf %12, %11 : vector<16x64xf32>
    %14 = arith.mulf %8, %13 : vector<16x64xf32>
    %15 = arith.truncf %14 : vector<16x64xf32> to vector<16x64xbf16>
    %c0_8 = arith.constant 0 : index
    %c0_9 = arith.constant 0 : index
    %16 = vector.load %arg4[%c0_8, %c0_9] : memref<64x32xbf16, #tpu.memory_space<vmem>>, vector<64x32xbf16>
    %cst_10 = arith.constant dense<0.000000e+00> : vector<16x32xf32>
    %17 = tpu.matmul %15, %16, %cst_10 {dimension_numbers = #tpu.dot_dimension_numbers<[1], [0], [0], [1], [0, 0, 1, 1], [], []>} : vector<16x64xbf16>, vector<64x32xbf16>, vector<16x32xf32> -> vector<16x32xf32>
    %c0_11 = arith.constant 0 : index
    %c0_12 = arith.constant 0 : index
    %18 = vector.load %arg5[%c0_11, %c0_12] : memref<1x32xf32, #tpu.memory_space<vmem>>, vector<1x32xf32>
    %19 = vector.broadcast %18 : vector<1x32xf32> to vector<16x32xf32>
    %20 = arith.addf %17, %19 : vector<16x32xf32>
    %c0_13 = arith.constant 0 : index
    %c0_14 = arith.constant 0 : index
    %21 = vector.load %arg6[%c0_13, %c0_14] : memref<16x32xf32, #tpu.memory_space<vmem>>, vector<16x32xf32>
    tpu.vector_store %arg6[%c0_13, %c0_14], %20 {strides = array<i32>} : memref<16x32xf32, #tpu.memory_space<vmem>>, vector<16x32xf32>,
    return
  }
  func.func @transform_0(%arg0: i32) -> (i32, i32) {
    %c0_i32 = arith.constant 0 : i32
    %c0_i32_0 = arith.constant 0 : i32
    return %arg0, %c0_i32 : i32, i32
  }
  func.func @transform_1(%arg0: i32) -> (i32, i32) {
    %c0_i32 = arith.constant 0 : i32
    %c0_i32_0 = arith.constant 0 : i32
    %c0_i32_1 = arith.constant 0 : i32
    return %c0_i32, %c0_i32_0 : i32, i32
  }
  func.func @transform_2(%arg0: i32) -> (i32, i32) {
    %c0_i32 = arith.constant 0 : i32
    %c0_i32_0 = arith.constant 0 : i32
    %c0_i32_1 = arith.constant 0 : i32
    return %c0_i32, %c0_i32_0 : i32, i32
  }
  func.func @transform_3(%arg0: i32) -> (i32, i32) {
    %c0_i32 = arith.constant 0 : i32
    %c0_i32_0 = arith.constant 0 : i32
    %c0_i32_1 = arith.constant 0 : i32
    return %c0_i32, %c0_i32_0 : i32, i32
  }
  func.func @transform_4(%arg0: i32) -> (i32, i32) {
    %c0_i32 = arith.constant 0 : i32
    %c0_i32_0 = arith.constant 0 : i32
    %c0_i32_1 = arith.constant 0 : i32
    return %c0_i32, %c0_i32_0 : i32, i32
  }
  func.func @transform_5(%arg0: i32) -> (i32, i32) {
    %c0_i32 = arith.constant 0 : i32
    %c0_i32_0 = arith.constant 0 : i32
    return %arg0, %c0_i32 : i32, i32
  }
}

</mosaic_0001>

<llo_original>
// kernel: tpu_custom_call.1
$region0: #{tpu_custom_call.1}
  #allocation0 [shape = 'u32[]', space=smem, size = 0x4, offset = 0x4, fixed_abs, tag = 'smem constant byte address 0x4 - core index']
  #allocation1 [shape = 'u32[72,128]{1,0:T(1,128)}', space=vmem, size = 0x9000, scoped, tag = 'internal scratch']
  %s0 = inlined_call_operand.vmem [shape: f32[16,32], index: 0, kind: input, shape index: {}]
  %s1 = inlined_call_operand.vmem [shape: bf16[32,64], index: 1, kind: input, shape index: {}]
  %s2 = inlined_call_operand.vmem [shape: f32[1,64], index: 2, kind: input, shape index: {}]
  %s3 = inlined_call_operand.vmem [shape: bf16[64,32], index: 3, kind: input, shape index: {}]
  %s4 = inlined_call_operand.vmem [shape: f32[1,32], index: 4, kind: input, shape index: {}]
  %s5 = inlined_call_operand.hbm [shape: f32[16,32], index: 5, kind: output, shape index: {}]
  %s6 = sld [smem:[#allocation0]]
  $region30: #{tpu_custom_call.1} parent=0
    _
  %s8 = ssub.s32 1, %s6
  %s9 = scalar_select 0, %s8, %s6
  $region1: #{tpu_custom_call.1} parent=0
    #allocation2 [shape = 'u8[8192]{0}', space=vmem, size = 0x2000, scoped, tag = 'output window, operand 0, single buffered']
    #allocation3 [shape = 's32[1]{0}', space=sflag, size = 0x4, scoped, tag = 'scoped memory for tpu_custom_call.1']
    %10 = vsyncpa [#allocation3], 0
    // Predicated region
    $region2: #{tpu_custom_call.1} parent=1 // pred_check
      _
    $region3: #{tpu_custom_call.1} parent=1 // pred_check_branch
      %12 = sbr.rel (0) target = $region5
    $region4: #{tpu_custom_call.1} parent=1 // pred_region
      _
    $region5: #{tpu_custom_call.1} parent=1 // pred_fallthru
      _
    // Predicated region
    $region6: #{tpu_custom_call.1} parent=1 // pred_check
      _
    $region7: #{tpu_custom_call.1} parent=1 // pred_check_branch
      %14 = sbr.rel (0) target = $region9
    $region8: #{tpu_custom_call.1} parent=1 // pred_region
      _
    $region9: #{tpu_custom_call.1} parent=1 // pred_fallthru
      _
    // Predicated region
    $region10: #{tpu_custom_call.1} parent=1 // pred_check
      _
    $region11: #{tpu_custom_call.1} parent=1 // pred_check_branch
      %16 = sbr.rel (0) target = $region13
    $region12: #{tpu_custom_call.1} parent=1 // pred_region
      _
    $region13: #{tpu_custom_call.1} parent=1 // pred_fallthru
      _
    // Predicated region
    $region14: #{tpu_custom_call.1} parent=1 // pred_check
      _
    $region15: #{tpu_custom_call.1} parent=1 // pred_check_branch
      %18 = sbr.rel (0) target = $region17
    $region16: #{tpu_custom_call.1} parent=1 // pred_region
      _
    $region17: #{tpu_custom_call.1} parent=1 // pred_fallthru
      _
    // Predicated region
    $region18: #{tpu_custom_call.1} parent=1 // pred_check
      _
    $region19: #{tpu_custom_call.1} parent=1 // pred_check_branch
      %20 = sbr.rel (0) target = $region21
    $region20: #{tpu_custom_call.1} parent=1 // pred_region
      _
    $region21: #{tpu_custom_call.1} parent=1 // pred_fallthru
      _
    %v22 = vld [vmem:[%s0] sm:$0xff]
    %v23 = vld [vmem:[%s0 + $0x8] sm:$0xff]
    %v24 = vpack.c.bf16 %v23, %v22
    %v25 = vld [vmem:[%s1] sm:$0xf]
    %v26 = vld [vmem:[%s1 + $0x4] sm:$0xf]
    %v27 = vld [vmem:[%s1 + $0x8] sm:$0xf]
    %v28 = vld [vmem:[%s1 + $0xc] sm:$0xf]
    %v29 = vld [vmem:[%s2] sm:$0x1]
    %v31 = vperm.slane %v29, 0
    %v37 = vunpack.c.l.b16 %v25
    %v38 = vunpack.c.l.b16 %v26
    %v39 = vunpack.c.l.b16 %v27
    %v40 = vunpack.c.l.b16 %v28
    %v41 = vpack.c.b16 %v38, %v37
    %v42 = vpack.c.b16 %v40, %v39
    %vm45 = vcmask 261120
    %v47 = vsel %vm45, %v24, 0
    %49 = vmatpush.bf16.msra.mxu0 0
    %50 = vmatpush.bf16.msra.mxu0 0
    %51 = vmatpush.bf16.msra.mxu0 0
    %52 = vmatpush.bf16.msra.mxu0 0
    %53 = vmatpush.bf16.msra.mxu0 0
    %54 = vmatpush.bf16.msra.mxu0 0
    %55 = vmatpush.bf16.msra.mxu0 %v42
    %56 = vmatpush.bf16.msra.mxu0 %v41
    %57 = vmatmul.bf16.gmra.mxu0 %v47
    %v58 = vpop.f32.mrf.mxu0
    %v59 = vadd.f32 %v31, %v58
    %v60 = vpop.f32.mrf.mxu0
    %v61 = vadd.f32 %v31, %v60
    %62 = vdwg.mxu0
    %v63 = vmul.f32 %v59, 0.5
    %v64 = vmul.f32 %v61, 0.5
    %v65 = vmul.f32 %v59, 0.70710677
    %v66 = vmul.f32 %v61, 0.70710677
    %v67 = vmul.f32 %v65, %v65
    %v68 = vmin.f32 16.0, %v67
    %v69 = vmul.f32 %v68, 2.1237322e-06
    %v70 = vadd.f32 %v69, 0.00028619796
    %v71 = vmul.f32 %v68, %v70
    %v72 = vadd.f32 %v71, 0.0036580483
    %v73 = vmul.f32 %v68, %v72
    %v74 = vadd.f32 %v73, 0.05243302
    %v75 = vmul.f32 %v68, %v74
    %v76 = vadd.f32 %v75, 0.18741608
    %v77 = vmul.f32 %v68, %v76
    %v78 = vadd.f32 %v77, 1.1283791
    %v79 = vmul.f32 %v65, %v78
    %v80 = vmul.f32 %v68, 3.8918573e-05
    %v81 = vadd.f32 %v80, 0.001143296
    %v82 = vmul.f32 %v68, %v81
    %v83 = vadd.f32 %v82, 0.014752088
    %v84 = vmul.f32 %v68, %v83
    %v85 = vadd.f32 %v84, 0.112945676
    %v86 = vmul.f32 %v68, %v85
    %v87 = vadd.f32 %v86, 0.4994258
    %v88 = vmul.f32 %v68, %v87
    %v89 = vadd.f32 %v88, 1.0
    %v90 = vrcp.pop %v89
    %v91 = vmul.f32 %v89, %v90
    %v92 = vsub.f32 1.0, %v91
    %v93 = vmul.f32 %v90, %v92
    %v94 = vadd.f32 %v90, %v93
    %vm95 = vweird.f32 %v89
    %vm96 = vweird.f32 %v90
    %vm97 = vmor %vm95, %vm96
    %v98 = vsel %vm97, %v90, %v94
    %v99 = vand.u32 2147483647, %v89
    %vm100 = vcmp.eq.f32.partialorder %v99, 8.507059e+37
    %v101 = vand.u32 %v89, 2147483648
    %v102 = vor.u32 1.1754944e-38, %v101
    %v103 = vsel %vm100, %v102, %v98
    %v104 = vmul.f32 %v79, %v103
    %v105 = vmin.f32 %v104, 1.0
    %v106 = vmax.f32 %v105, -1.0
    %v107 = vmul.f32 %v66, %v66
    %v108 = vmin.f32 16.0, %v107
    %v109 = vmul.f32 %v108, 2.1237322e-06
    %v110 = vadd.f32 %v109, 0.00028619796
    %v111 = vmul.f32 %v108, %v110
    %v112 = vadd.f32 %v111, 0.0036580483
    %v113 = vmul.f32 %v108, %v112
    %v114 = vadd.f32 %v113, 0.05243302
    %v115 = vmul.f32 %v108, %v114
    %v116 = vadd.f32 %v115, 0.18741608
    %v117 = vmul.f32 %v108, %v116
    %v118 = vadd.f32 %v117, 1.1283791
    %v119 = vmul.f32 %v66, %v118
    %v120 = vmul.f32 %v108, 3.8918573e-05
    %v121 = vadd.f32 %v120, 0.001143296
    %v122 = vmul.f32 %v108, %v121
    %v123 = vadd.f32 %v122, 0.014752088
    %v124 = vmul.f32 %v108, %v123
    %v125 = vadd.f32 %v124, 0.112945676
    %v126 = vmul.f32 %v108, %v125
    %v127 = vadd.f32 %v126, 0.4994258
    %v128 = vmul.f32 %v108, %v127
    %v129 = vadd.f32 %v128, 1.0
    %v130 = vrcp.pop %v129
    %v131 = vmul.f32 %v129, %v130
    %v132 = vsub.f32 1.0, %v131
    %v133 = vmul.f32 %v130, %v132
    %v134 = vadd.f32 %v130, %v133
    %vm135 = vweird.f32 %v129
    %vm136 = vweird.f32 %v130
    %vm137 = vmor %vm135, %vm136
    %v138 = vsel %vm137, %v130, %v134
    %v139 = vand.u32 2147483647, %v129
    %vm140 = vcmp.eq.f32.partialorder %v139, 8.507059e+37
    %v141 = vand.u32 %v129, 2147483648
    %v142 = vor.u32 1.1754944e-38, %v141
    %v143 = vsel %vm140, %v142, %v138
    %v144 = vmul.f32 %v119, %v143
    %v145 = vmin.f32 %v144, 1.0
    %v146 = vmax.f32 %v145, -1.0
    %v147 = vadd.f32 %v106, 1.0
    %v148 = vadd.f32 %v146, 1.0
    %v149 = vmul.f32 %v63, %v147
    %v150 = vmul.f32 %v64, %v148
    %v151 = vpack.c.bf16 %v150, %v149
    %v152 = vld [vmem:[%s3] sm:$0xf]
    %v153 = vld [vmem:[%s3 + $0x4] sm:$0xf]
    %v154 = vld [vmem:[%s3 + $0x8] sm:$0xf]
    %v155 = vld [vmem:[%s3 + $0xc] sm:$0xf]
    %v156 = vld [vmem:[%s3 + $0x10] sm:$0xf]
    %v157 = vld [vmem:[%s3 + $0x14] sm:$0xf]
    %v158 = vld [vmem:[%s3 + $0x18] sm:$0xf]
    %v159 = vld [vmem:[%s3 + $0x1c] sm:$0xf]
    %v160 = vld [vmem:[%s4] sm:$0x1]
    %v162 = vperm.slane %v160, 0
    %v172 = vunpack.c.l.b16 %v152
    %v173 = vunpack.c.l.b16 %v153
    %v174 = vunpack.c.l.b16 %v154
    %v175 = vunpack.c.l.b16 %v155
    %v176 = vunpack.c.l.b16 %v156
    %v177 = vunpack.c.l.b16 %v157
    %v178 = vunpack.c.l.b16 %v158
    %v179 = vunpack.c.l.b16 %v159
    %v180 = vpack.c.b16 %v173, %v172
    %v181 = vpack.c.b16 %v175, %v174
    %v182 = vpack.c.b16 %v177, %v176
    %v183 = vpack.c.b16 %v179, %v178
    %vm188 = vcmask 523264
    %v190 = vsel %vm188, %v151, 0
    %192 = vmatpush.bf16.msra.mxu0 0
    %193 = vmatpush.bf16.msra.mxu0 0
    %194 = vmatpush.bf16.msra.mxu0 0
    %195 = vmatpush.bf16.msra.mxu0 0
    %196 = vmatpush.bf16.msra.mxu0 %v183
    %197 = vmatpush.bf16.msra.mxu0 %v182
    %198 = vmatpush.bf16.msra.mxu0 %v181
    %199 = vmatpush.bf16.msra.mxu0 %v180
    %200 = vmatmul.bf16.gmra.mxu0 %v190
    %v201 = vpop.f32.mrf.mxu0
    %v202 = vadd.f32 %v162, %v201
    %v203 = vpop.f32.mrf.mxu0
    %v204 = vadd.f32 %v162, %v203
    %205 = vdwg.mxu0
    %206 = vst.msk [vmem:[#allocation2] sm:$0xff] %vm45, %v202
    %207 = vst.msk [vmem:[#allocation2 + $0x8] sm:$0xff] %vm45, %v204
    // Predicated region
    $region22: #{tpu_custom_call.1} parent=1 // pred_check
      _
    $region23: #{tpu_custom_call.1} parent=1 // pred_check_branch
      %209 = sbr.rel (0) target = $region25
    $region24: #{tpu_custom_call.1} parent=1 // pred_region
      %211 = vsyncadd [#allocation3], 0
      %s212 = sshll.u32 [#allocation2], 4
      %s213 = int_to_ptr.vmem [resolvable:$true] %s212
      %s214 = sshll.u32 %s5, 4
      %s215 = int_to_ptr.hbm [resolvable:$true] %s214
      %220 = dma.vmem_to_hbm [thread:$0]  %s213, 256, %s215, [#allocation3], 128, 128, 8
    $region25: #{tpu_custom_call.1} parent=1 // pred_fallthru
      _
    // Predicated region
    $region26: #{tpu_custom_call.1} parent=1 // pred_check
      _
    $region27: #{tpu_custom_call.1} parent=1 // pred_check_branch
      %222 = sbr.rel (0) target = $region29
    $region28: #{tpu_custom_call.1} parent=1 // pred_region
      %224 = dma.done [#allocation3], 256
    $region29: #{tpu_custom_call.1} parent=1 // pred_fallthru
      _
    %225 = vsyncpa [#allocation3], 1

</llo_original>
